<compile_context>
chip_gen: v6e
topology: v6e:2x2x1
jax: 0.10.0
libtpu: 0.0.40
codegen_flags: <defaults>
</compile_context>

<pallas_src>
import functools

import jax
import jax.numpy as jnp
from jax import lax
from jax.experimental import pallas as pl
from jax.experimental.pallas import tpu as pltpu


def _attention_kernel(c_in, c_out, k_num, hw_total, tile_hw, inv_hw,
                      taps_ref, x_ref, wcat_ref, inch_ref, mix_ref, acc_ref):
    hw = pl.program_id(1)
    n_hw = pl.num_programs(1)
    is_last = hw == n_hw - 1

    # ---- zero the pooled-sum accumulator at the start of every batch row ----
    @pl.when(hw == 0)
    def _init():
        acc_ref[...] = jnp.zeros_like(acc_ref)

    # ---- accumulate the spatial sum for this (batch, spatial-tile) block ----
    def _accumulate(mask_tail):
        xt = x_ref[...].astype(jnp.float32)                    # (C_in, TILE_HW)
        if mask_tail:
            # mask lanes past the true spatial extent (ragged last tile); zeros
            # do not perturb the sum, so no host-side padding of x is required.
            rem = hw_total - hw * tile_hw
            lane = lax.broadcasted_iota(jnp.int32, (c_in, tile_hw), 1)
            xt = jnp.where(lane < rem, xt, 0.0)
        acc_ref[...] += jnp.sum(xt, axis=-1, keepdims=True)    # (C_in, 1)

    if hw_total % tile_hw == 0:
        # static fast path: no masking anywhere in the hot loop
        _accumulate(False)
    else:
        @pl.when(jnp.logical_not(is_last))
        def _full_tile():
            _accumulate(False)

        @pl.when(is_last)
        def _ragged_tile():
            _accumulate(True)

    # ---- epilogue: tiny O(C) math, once per batch row ----
    @pl.when(is_last)
    def _epilogue():
        pooled = acc_ref[...] * inv_hw                         # AdaptiveAvgPool2d(1)

        # Conv1d(1,1,3,padding=1,bias=False) over the channel axis, expressed as
        # a banded (C_in, C_in) matrix built in-registers from the 3 SMEM taps.
        # Runs once per batch row -> negligible vs. the HBM stream of x.
        # TODO(synk): for very large C_in switch to pltpu.roll-based shifted taps.
        w0 = taps_ref[0]
        w1 = taps_ref[1]
        w2 = taps_ref[2]
        row = lax.broadcasted_iota(jnp.int32, (c_in, c_in), 0)   # output channel i
        col = lax.broadcasted_iota(jnp.int32, (c_in, c_in), 1)   # input channel j
        band = (jnp.where(col == row - 1, w0, 0.0)
                + jnp.where(col == row, w1, 0.0)
                + jnp.where(col == row + 1, w2, 0.0))
        y = jnp.dot(band, pooled, preferred_element_type=jnp.float32)   # (C_in, 1)

        # branch 1: sigmoid(y)
        inch_ref[...] = jax.nn.sigmoid(y)

        # branches 2+3 fused into one matmul: rows [0, C_out) -> sigmoid,
        # rows [C_out, C_out+K) -> softmax over K.
        proj = jnp.dot(wcat_ref[...], y, preferred_element_type=jnp.float32)
        ridx = lax.broadcasted_iota(jnp.int32, (c_out + k_num, 1), 0)
        is_k = ridx >= c_out

        masked = jnp.where(is_k, proj, -jnp.inf)
        kmax = jnp.max(masked, axis=0, keepdims=True)
        e = jnp.exp(masked - kmax)                       # exactly 0 on sigmoid rows
        denom = jnp.sum(e, axis=0, keepdims=True)
        soft = e * pl.reciprocal(denom, approx=True)

        mix_ref[...] = jnp.where(is_k, soft, jax.nn.sigmoid(proj))


def attention_forward(x, w1d, w_out, w_k, *, tile_hw=None,
                      max_block_bytes=4 * 1024 * 1024):
    """x: (B, C_in, H, W) (any float dtype, NCHW).  w1d: (1,1,3).
    w_out: (C_out, C_in, 1, 1).  w_k: (K, C_in, 1, 1).
    Returns the same three tensors as the PyTorch module."""
    B, C_in, H, W = x.shape
    C_out = w_out.shape[0]
    K = w_k.shape[0]
    HW = H * W

    xf = x.reshape(B, C_in, HW)                 # free reshape; cast in-kernel
    itemsize = xf.dtype.itemsize

    # choose the spatial tile: multiple of 128 lanes, sized for double-buffered VMEM
    if tile_hw is None:
        max_lanes = max(128, ((max_block_bytes // (C_in * itemsize)) // 128) * 128)
        tile_hw = HW if HW <= max_lanes else max_lanes
    tile_hw = min(tile_hw, HW)
    if tile_hw < HW:
        assert tile_hw % 128 == 0, "tile_hw must be a multiple of 128 when it tiles HW"
    grid_hw = pl.cdiv(HW, tile_hw)

    # weight prep (tiny; in a real model this is hoisted/cached per parameter set)
    taps = w1d.reshape(3).astype(jnp.float32)
    wcat = jnp.concatenate(
        [w_out.reshape(C_out, C_in), w_k.reshape(K, C_in)], axis=0
    ).astype(jnp.float32)                                        # (C_out+K, C_in)

    kernel = functools.partial(_attention_kernel, C_in, C_out, K, HW, tile_hw,
                               float(1.0 / HW))

    grid_spec = pltpu.PrefetchScalarGridSpec(
        num_scalar_prefetch=0,
        grid=(B, grid_hw),
        in_specs=[
            pl.BlockSpec(memory_space=pltpu.MemorySpace.SMEM),               # taps
            pl.BlockSpec((None, C_in, tile_hw), lambda b, hw: (b, 0, hw)),   # x
            pl.BlockSpec((C_out + K, C_in), lambda b, hw: (0, 0)),           # wcat
        ],
        out_specs=(
            pl.BlockSpec((None, C_in, 1), lambda b, hw: (b, 0, 0)),
            pl.BlockSpec((None, C_out + K, 1), lambda b, hw: (b, 0, 0)),
        ),
        scratch_shapes=[pltpu.VMEM((C_in, 1), jnp.float32)],
    )

    block_bytes = C_in * tile_hw * itemsize
    wcat_bytes = (C_out + K) * C_in * 4
    vmem_need = 2 * block_bytes + 2 * wcat_bytes + (2 * C_in + C_out + K) * 4 + (1 << 20)
    vmem_limit = int(min(max(vmem_need, 32 * 1024 * 1024), 48 * 1024 * 1024))

    cost = pl.CostEstimate(
        flops=int(B * (C_in * HW + 2 * C_in * C_in + 2 * C_in * (C_out + K))),
        transcendentals=int(B * (C_in + C_out + 2 * K)),
        bytes_accessed=int(xf.size * itemsize + wcat_bytes + 12
                           + B * (2 * C_in + C_out + K) * 4),
    )

    inch, mix = pl.pallas_call(
        kernel,
        grid_spec=grid_spec,
        out_shape=(jax.ShapeDtypeStruct((B, C_in, 1), jnp.float32),
                   jax.ShapeDtypeStruct((B, C_out + K, 1), jnp.float32)),
        compiler_params=pltpu.CompilerParams(
            dimension_semantics=("parallel", "arbitrary"),
            vmem_limit_bytes=vmem_limit),
        cost_estimate=cost,
    )(taps, xf, wcat)

    x_inchannel = inch.reshape(B, C_in, 1, 1)
    x_outchannel = mix[:, :C_out, :].reshape(B, C_out, 1, 1)
    x_kernel = mix[:, C_out:, :].reshape(B, K, 1, 1, 1, 1)
    return x_inchannel, x_outchannel, x_kernel


def attention_ref(x, w1d, w_out, w_k):
    """Pure-JAX reference used only for the correctness check."""
    B, C_in, H, W = x.shape
    pooled = jnp.mean(x.astype(jnp.float32), axis=(2, 3))            # (B, C_in)
    taps = w1d.reshape(3).astype(jnp.float32)
    p = jnp.pad(pooled, ((0, 0), (1, 1)))
    y = taps[0] * p[:, :-2] + taps[1] * p[:, 1:-1] + taps[2] * p[:, 2:]
    inch = jax.nn.sigmoid(y).reshape(B, C_in, 1, 1)
    wo = w_out.reshape(w_out.shape[0], C_in).astype(jnp.float32)
    wk = w_k.reshape(w_k.shape[0], C_in).astype(jnp.float32)
    outch = jax.nn.sigmoid(y @ wo.T).reshape(B, -1, 1, 1)
    kern = jax.nn.softmax(y @ wk.T, axis=-1).reshape(B, -1, 1, 1, 1, 1)
    return inch, outch, kern


if __name__ == "__main__":
    B, C_in, C_out, K_NUM, H, W = 2, 16, 32, 4, 20, 20

    key = jax.random.PRNGKey(0)
    kx, k1, k2, k3 = jax.random.split(key, 4)

    x = jax.random.normal(kx, (B, C_in, H, W), dtype=jnp.float32)
    # Conv1d(1,1,3): PyTorch default uniform init, bound = 1/sqrt(fan_in=3)
    w1d = jax.random.uniform(k1, (1, 1, 3), dtype=jnp.float32,
                             minval=-1.0 / jnp.sqrt(3.0), maxval=1.0 / jnp.sqrt(3.0))
    # Conv2d 1x1 layers: kaiming_normal_(mode='fan_out') => std = sqrt(2/out_ch)
    w_out = jax.random.normal(k2, (C_out, C_in, 1, 1), dtype=jnp.float32) * jnp.sqrt(2.0 / C_out)
    w_k = jax.random.normal(k3, (K_NUM, C_in, 1, 1), dtype=jnp.float32) * jnp.sqrt(2.0 / K_NUM)

    refs = attention_ref(x, w1d, w_out, w_k)

    # small spatial tiles so the pipelined multi-step reduction AND the ragged
    # last tile (400 = 3*128 + 16) are exercised even at these toy sizes
    outs = jax.block_until_ready(attention_forward(x, w1d, w_out, w_k, tile_hw=128))
    for o, r in zip(outs, refs):
        assert o.shape == r.shape, (o.shape, r.shape)
        assert jnp.allclose(o, r, atol=1e-3, rtol=1e-3), "mismatch vs reference"

    # also check the auto-tiled (single spatial tile, mask-free fast path)
    outs2 = jax.block_until_ready(attention_forward(x, w1d, w_out, w_k))
    for o, r in zip(outs2, refs):
        assert o.shape == r.shape, (o.shape, r.shape)
        assert jnp.allclose(o, r, atol=1e-3, rtol=1e-3), "mismatch vs reference (auto tile)"

    print("KERNEL_OK")
</pallas_src>

<mosaic_0001>
module attributes {stable_mosaic.version = 11 : i64} {
  func.func @_attention_kernel(%arg0: i32, %arg1: i32, %arg2: memref<3xf32, #tpu.memory_space<smem>>, %arg3: memref<1x16x128xf32, #tpu.memory_space<vmem>>, %arg4: memref<36x16xf32, #tpu.memory_space<vmem>>, %arg5: memref<1x16x1xf32, #tpu.memory_space<vmem>>, %arg6: memref<1x36x1xf32, #tpu.memory_space<vmem>>, %arg7: memref<16x1xf32, #tpu.memory_space<vmem>>) attributes {dimension_semantics = [#tpu.dimension_semantics<parallel>, #tpu.dimension_semantics<arbitrary>], iteration_bounds = array<i64: 2, 4>, scalar_prefetch = 0 : i64, scratch_operands = 1 : i64, tpu.core_type = #tpu.core_type<tc>, window_params = [{transform_indices = @transform_0, window_bounds = array<i64: 3>}, {transform_indices = @transform_1, window_bounds = array<i64: 1, 16, 128>}, {pipeline_mode = #tpu.pipeline_mode<synchronous>, transform_indices = @transform_2, window_bounds = array<i64: 36, 16>}, {transform_indices = @transform_3, window_bounds = array<i64: 1, 16, 1>}, {transform_indices = @transform_4, window_bounds = array<i64: 1, 36, 1>}]} {
    %c3_i32 = arith.constant 3 : i32
    %0 = arith.cmpi eq, %arg1, %c3_i32 : i32
    %c0_i32 = arith.constant 0 : i32
    %1 = arith.cmpi eq, %arg1, %c0_i32 : i32
    %2 = arith.extui %1 : i1 to i32
    %c0_i32_0 = arith.constant 0 : i32
    %3 = arith.cmpi ne, %2, %c0_i32_0 : i32
    scf.if %3 {
      %cst = arith.constant 0.000000e+00 : f32
      %11 = vector.broadcast %cst : f32 to vector<16x1xf32>
      %c0 = arith.constant 0 : index
      %c0_4 = arith.constant 0 : index
      %12 = vector.load %arg7[%c0, %c0_4] : memref<16x1xf32, #tpu.memory_space<vmem>>, vector<16x1xf32>
      tpu.vector_store %arg7[%c0, %c0_4], %11 {strides = array<i32>} : memref<16x1xf32, #tpu.memory_space<vmem>>, vector<16x1xf32>,
    } else {
    }
    %true = arith.constant true
    %4 = arith.xori %0, %true : i1
    %5 = arith.extui %4 : i1 to i32
    %c0_i32_1 = arith.constant 0 : i32
    %6 = arith.cmpi ne, %5, %c0_i32_1 : i32
    scf.if %6 {
      %c0 = arith.constant 0 : index
      %c0_4 = arith.constant 0 : index
      %c0_5 = arith.constant 0 : index
      %11 = vector.load %arg3[%c0, %c0_4, %c0_5] : memref<1x16x128xf32, #tpu.memory_space<vmem>>, vector<1x16x128xf32>
      %12 = vector.shape_cast %11 : vector<1x16x128xf32> to vector<16x128xf32>
      %c0_6 = arith.constant 0 : index
      %c0_7 = arith.constant 0 : index
      %13 = vector.load %arg7[%c0_6, %c0_7] : memref<16x1xf32, #tpu.memory_space<vmem>>, vector<16x1xf32>
      %cst = arith.constant dense<0.000000e+00> : vector<16xf32>
      %14 = vector.multi_reduction <add>, %12, %cst [1] : vector<16x128xf32> to vector<16xf32>
      %15 = vector.shape_cast %14 : vector<16xf32> to vector<16x1xf32>
      %16 = arith.addf %13, %15 : vector<16x1xf32>
      %c0_8 = arith.constant 0 : index
      %c0_9 = arith.constant 0 : index
      %17 = vector.load %arg7[%c0_8, %c0_9] : memref<16x1xf32, #tpu.memory_space<vmem>>, vector<16x1xf32>
      tpu.vector_store %arg7[%c0_8, %c0_9], %16 {strides = array<i32>} : memref<16x1xf32, #tpu.memory_space<vmem>>, vector<16x1xf32>,
    } else {
    }
    %7 = arith.extui %0 : i1 to i32
    %c0_i32_2 = arith.constant 0 : i32
    %8 = arith.cmpi ne, %7, %c0_i32_2 : i32
    scf.if %8 {
      %c0 = arith.constant 0 : index
      %c0_4 = arith.constant 0 : index
      %c0_5 = arith.constant 0 : index
      %11 = vector.load %arg3[%c0, %c0_4, %c0_5] : memref<1x16x128xf32, #tpu.memory_space<vmem>>, vector<1x16x128xf32>
      %12 = vector.shape_cast %11 : vector<1x16x128xf32> to vector<16x128xf32>
      %c128_i32 = arith.constant 128 : i32
      %13 = arith.muli %arg1, %c128_i32 : i32
      %c400_i32 = arith.constant 400 : i32
      %14 = arith.subi %c400_i32, %13 : i32
      %15 = tpu.iota {dimensions = array<i32: 1>} : vector<16x128xi32>
      %16 = vector.broadcast %14 : i32 to vector<16x128xi32>
      %17 = arith.cmpi slt, %15, %16 : vector<16x128xi32>
      %cst = arith.constant 0.000000e+00 : f32
      %18 = vector.broadcast %cst : f32 to vector<16x128xf32>
      %19 = arith.select %17, %12, %18 : vector<16x128xi1>, vector<16x128xf32>
      %c0_6 = arith.constant 0 : index
      %c0_7 = arith.constant 0 : index
      %20 = vector.load %arg7[%c0_6, %c0_7] : memref<16x1xf32, #tpu.memory_space<vmem>>, vector<16x1xf32>
      %cst_8 = arith.constant dense<0.000000e+00> : vector<16xf32>
      %21 = vector.multi_reduction <add>, %19, %cst_8 [1] : vector<16x128xf32> to vector<16xf32>
      %22 = vector.shape_cast %21 : vector<16xf32> to vector<16x1xf32>
      %23 = arith.addf %20, %22 : vector<16x1xf32>
      %c0_9 = arith.constant 0 : index
      %c0_10 = arith.constant 0 : index
      %24 = vector.load %arg7[%c0_9, %c0_10] : memref<16x1xf32, #tpu.memory_space<vmem>>, vector<16x1xf32>
      tpu.vector_store %arg7[%c0_9, %c0_10], %23 {strides = array<i32>} : memref<16x1xf32, #tpu.memory_space<vmem>>, vector<16x1xf32>,
    } else {
    }
    %9 = arith.extui %0 : i1 to i32
    %c0_i32_3 = arith.constant 0 : i32
    %10 = arith.cmpi ne, %9, %c0_i32_3 : i32
    scf.if %10 {
      %c0 = arith.constant 0 : index
      %c0_4 = arith.constant 0 : index
      %11 = vector.load %arg7[%c0, %c0_4] : memref<16x1xf32, #tpu.memory_space<vmem>>, vector<16x1xf32>
      %cst = arith.constant 2.500000e-03 : f32
      %12 = vector.broadcast %cst : f32 to vector<16x1xf32>
      %13 = arith.mulf %11, %12 : vector<16x1xf32>
      %c0_5 = arith.constant 0 : index
      %14 = memref.load %arg2[%c0_5] : memref<3xf32, #tpu.memory_space<smem>>
      %c1 = arith.constant 1 : index
      %15 = memref.load %arg2[%c1] : memref<3xf32, #tpu.memory_space<smem>>
      %c2 = arith.constant 2 : index
      %16 = memref.load %arg2[%c2] : memref<3xf32, #tpu.memory_space<smem>>
      %17 = tpu.iota {dimensions = array<i32: 0>} : vector<16x16xi32>
      %18 = tpu.iota {dimensions = array<i32: 1>} : vector<16x16xi32>
      %c1_i32 = arith.constant 1 : i32
      %19 = vector.broadcast %c1_i32 : i32 to vector<16x16xi32>
      %20 = arith.subi %17, %19 : vector<16x16xi32>
      %21 = arith.cmpi eq, %18, %20 : vector<16x16xi32>
      %cst_6 = arith.constant 0.000000e+00 : f32
      %22 = vector.broadcast %14 : f32 to vector<16x16xf32>
      %23 = vector.broadcast %cst_6 : f32 to vector<16x16xf32>
      %24 = arith.select %21, %22, %23 : vector<16x16xi1>, vector<16x16xf32>
      %25 = arith.cmpi eq, %18, %17 : vector<16x16xi32>
      %cst_7 = arith.constant 0.000000e+00 : f32
      %26 = vector.broadcast %15 : f32 to vector<16x16xf32>
      %27 = vector.broadcast %cst_7 : f32 to vector<16x16xf32>
      %28 = arith.select %25, %26, %27 : vector<16x16xi1>, vector<16x16xf32>
      %29 = arith.addf %24, %28 : vector<16x16xf32>
      %c1_i32_8 = arith.constant 1 : i32
      %30 = vector.broadcast %c1_i32_8 : i32 to vector<16x16xi32>
      %31 = arith.addi %17, %30 : vector<16x16xi32>
      %32 = arith.cmpi eq, %18, %31 : vector<16x16xi32>
      %cst_9 = arith.constant 0.000000e+00 : f32
      %33 = vector.broadcast %16 : f32 to vector<16x16xf32>
      %34 = vector.broadcast %cst_9 : f32 to vector<16x16xf32>
      %35 = arith.select %32, %33, %34 : vector<16x16xi1>, vector<16x16xf32>
      %36 = arith.addf %29, %35 : vector<16x16xf32>
      %cst_10 = arith.constant dense<0.000000e+00> : vector<16x1xf32>
      %37 = tpu.matmul %36, %13, %cst_10 {dimension_numbers = #tpu.dot_dimension_numbers<[1], [0], [0], [1], [0, 0, 1, 1], [], []>} : vector<16x16xf32>, vector<16x1xf32>, vector<16x1xf32> -> vector<16x1xf32>
      %38 = arith.negf %37 : vector<16x1xf32>
      %39 = math.exp %38 : vector<16x1xf32>
      %cst_11 = arith.constant 1.000000e+00 : f32
      %40 = vector.broadcast %cst_11 : f32 to vector<16x1xf32>
      %41 = arith.addf %40, %39 : vector<16x1xf32>
      %42 = arith.divf %40, %41 : vector<16x1xf32>
      %c0_12 = arith.constant 0 : index
      %c0_13 = arith.constant 0 : index
      %c0_14 = arith.constant 0 : index
      %43 = vector.load %arg5[%c0_12, %c0_13, %c0_14] : memref<1x16x1xf32, #tpu.memory_space<vmem>>, vector<1x16x1xf32>
      %44 = vector.shape_cast %43 : vector<1x16x1xf32> to vector<16x1xf32>
      %45 = vector.shape_cast %42 : vector<16x1xf32> to vector<1x16x1xf32>
      tpu.vector_store %arg5[%c0_12, %c0_13, %c0_14], %45 {strides = array<i32>} : memref<1x16x1xf32, #tpu.memory_space<vmem>>, vector<1x16x1xf32>,
      %c0_15 = arith.constant 0 : index
      %c0_16 = arith.constant 0 : index
      %46 = vector.load %arg4[%c0_15, %c0_16] : memref<36x16xf32, #tpu.memory_space<vmem>>, vector<36x16xf32>
      %cst_17 = arith.constant dense<0.000000e+00> : vector<36x1xf32>
      %47 = tpu.matmul %46, %37, %cst_17 {dimension_numbers = #tpu.dot_dimension_numbers<[1], [0], [0], [1], [0, 0, 1, 1], [], []>} : vector<36x16xf32>, vector<16x1xf32>, vector<36x1xf32> -> vector<36x1xf32>
      %48 = tpu.iota {dimensions = array<i32: 0>} : vector<36x1xi32>
      %c32_i32 = arith.constant 32 : i32
      %49 = vector.broadcast %c32_i32 : i32 to vector<36x1xi32>
      %50 = arith.cmpi sge, %48, %49 : vector<36x1xi32>
      %cst_18 = arith.constant 0xFF800000 : f32
      %51 = vector.broadcast %cst_18 : f32 to vector<36x1xf32>
      %52 = arith.select %50, %47, %51 : vector<36x1xi1>, vector<36x1xf32>
      %cst_19 = arith.constant dense<0xFF800000> : vector<1xf32>
      %53 = vector.multi_reduction <maximumf>, %52, %cst_19 [0] : vector<36x1xf32> to vector<1xf32>
      %54 = vector.shape_cast %53 : vector<1xf32> to vector<1x1xf32>
      %55 = vector.broadcast %54 : vector<1x1xf32> to vector<36x1xf32>
      %56 = arith.subf %52, %55 : vector<36x1xf32>
      %57 = math.exp %56 : vector<36x1xf32>
      %cst_20 = arith.constant dense<0.000000e+00> : vector<1xf32>
      %58 = vector.multi_reduction <add>, %57, %cst_20 [0] : vector<36x1xf32> to vector<1xf32>
      %59 = vector.shape_cast %58 : vector<1xf32> to vector<1x1xf32>
      %60 = tpu.reciprocal %59 {approx = true} : vector<1x1xf32> -> vector<1x1xf32>
      %61 = vector.broadcast %60 : vector<1x1xf32> to vector<36x1xf32>
      %62 = arith.mulf %57, %61 : vector<36x1xf32>
      %63 = arith.negf %47 : vector<36x1xf32>
      %64 = math.exp %63 : vector<36x1xf32>
      %cst_21 = arith.constant 1.000000e+00 : f32
      %65 = vector.broadcast %cst_21 : f32 to vector<36x1xf32>
      %66 = arith.addf %65, %64 : vector<36x1xf32>
      %67 = arith.divf %65, %66 : vector<36x1xf32>
      %68 = arith.select %50, %62, %67 : vector<36x1xi1>, vector<36x1xf32>
      %c0_22 = arith.constant 0 : index
      %c0_23 = arith.constant 0 : index
      %c0_24 = arith.constant 0 : index
      %69 = vector.load %arg6[%c0_22, %c0_23, %c0_24] : memref<1x36x1xf32, #tpu.memory_space<vmem>>, vector<1x36x1xf32>
      %70 = vector.shape_cast %69 : vector<1x36x1xf32> to vector<36x1xf32>
      %71 = vector.shape_cast %68 : vector<36x1xf32> to vector<1x36x1xf32>
      tpu.vector_store %arg6[%c0_22, %c0_23, %c0_24], %71 {strides = array<i32>} : memref<1x36x1xf32, #tpu.memory_space<vmem>>, vector<1x36x1xf32>,
    } else {
    }
    return
  }
  func.func @transform_0(%arg0: i32, %arg1: i32) -> i32 {
    %c0_i32 = arith.constant 0 : i32
    %c0_i32_0 = arith.constant 0 : i32
    return %c0_i32 : i32
  }
  func.func @transform_1(%arg0: i32, %arg1: i32) -> (i32, i32, i32) {
    %c0_i32 = arith.constant 0 : i32
    %c0_i32_0 = arith.constant 0 : i32
    return %arg0, %c0_i32, %arg1 : i32, i32, i32
  }
  func.func @transform_2(%arg0: i32, %arg1: i32) -> (i32, i32) {
    %c0_i32 = arith.constant 0 : i32
    %c0_i32_0 = arith.constant 0 : i32
    %c0_i32_1 = arith.constant 0 : i32
    return %c0_i32, %c0_i32_0 : i32, i32
  }
  func.func @transform_3(%arg0: i32, %arg1: i32) -> (i32, i32, i32) {
    %c0_i32 = arith.constant 0 : i32
    %c0_i32_0 = arith.constant 0 : i32
    %c0_i32_1 = arith.constant 0 : i32
    return %arg0, %c0_i32, %c0_i32_0 : i32, i32, i32
  }
  func.func @transform_4(%arg0: i32, %arg1: i32) -> (i32, i32, i32) {
    %c0_i32 = arith.constant 0 : i32
    %c0_i32_0 = arith.constant 0 : i32
    %c0_i32_1 = arith.constant 0 : i32
    return %arg0, %c0_i32, %c0_i32_0 : i32, i32, i32
  }
}

</mosaic_0001>

<llo_original>
// kernel: tpu_custom_call.1
$region0: #{tpu_custom_call.1}
  #allocation0 [shape = 'u32[]', space=smem, size = 0x4, offset = 0x4, fixed_abs, tag = 'smem constant byte address 0x4 - core index']
  #allocation1 [shape = 'u32[144,128]{1,0:T(1,128)}', space=vmem, size = 0x12000, scoped, tag = 'internal scratch']
  #allocation2 [shape = 'f32[16,1]{1,0:T(8,128)}', space=vmem, size = 0x2000, scoped, tag = 'scratch operand']
  %s0 = inlined_call_operand.vmem [shape: f32[3], index: 0, kind: input, shape index: {}]
  %s1 = inlined_call_operand.hbm [shape: f32[2,16,400], index: 1, kind: input, shape index: {}]
  %s2 = inlined_call_operand.vmem [shape: f32[36,16], index: 2, kind: input, shape index: {}]
  %s3 = inlined_call_operand.vmem [shape: f32[2,16,1], index: 3, kind: output, shape index: {0}]
  %s4 = inlined_call_operand.vmem [shape: f32[2,36,1], index: 4, kind: output, shape index: {1}]
  %5 = xla_tuple %s3, %s4
  %s6 = sld [smem:[#allocation0]]
  $region73: #{tpu_custom_call.1} parent=0
    _
  %s8 = ssub.s32 1, %s6
  %s9 = scalar_select 0, %s8, %s6
  $region1: #{tpu_custom_call.1} parent=0
    #allocation3 [shape = 'u8[512]{0}', space=smem, size = 0x200, scoped, tag = 'input window, operand 0, single buffered']
    #allocation4 [shape = 's32[2]{0}', space=sflag, size = 0x8, scoped, tag = 'scoped memory for tpu_custom_call.1']
    #allocation5 [shape = 's32[2]{0}', space=sflag, size = 0x8, scoped, tag = 'scoped memory for tpu_custom_call.1']
    #allocation6 [shape = 'u8[16384]{0}', space=vmem, size = 0x4000, scoped, tag = 'input window, operand 1']
    %10 = vsyncpa [#allocation5], 0
    %11 = vsyncpa [#allocation4], 0
    %s12 = scalar_lea.sflag [#allocation4], 1
    %13 = vsyncpa %s12, 0
    loop: start=0, step=1, limit=10
    $region2: #{tpu_custom_call.1} parent=1 // loop_pre_header
      _
    $region3: #{tpu_custom_call.1} parent=1 // loop_header
      %s15 = sphi 0, %s19
      %p16 = scmp.ge.s32.totalorder %s15, 10
      %s22 = sphi 0, %s34
      %s23 = sphi 0, %s30
      %s24 = sphi 0, %s22
      %s25 = sphi 0, %s23
      %s26 = sphi 0, %s24
      %s27 = sphi 0, %s25
      %s35 = sphi 0, %s35
      %s37 = sphi 0, %s35
      %s38 = sphi 0, %s37
      %s52 = sphi 0, %s38
      %s60 = sphi 0, %s62
      %s63 = sphi 0, %s60
      %s64 = sphi 0, %s63
      %s80 = sphi 0, %s64
      %s84 = sphi 0, %s84
      %s86 = sphi 0, %s84
      %s87 = sphi 0, %s86
      %s101 = sphi 0, %s87
      %s107 = sphi 0, %s109
      %s110 = sphi 0, %s107
      %s111 = sphi 0, %s110
      %s127 = sphi 0, %s111
      %s133 = sphi 0, %s135
      %s136 = sphi 0, %s133
      %s137 = sphi 0, %s136
      %s153 = sphi 0, %s137
    $region4: #{tpu_custom_call.1} parent=1 // loop_header_branch
      %18 = sbr.rel (%p16) target = $region8
    $region5: #{tpu_custom_call.1} parent=1 // loop_body
      %s20 = ssub.s32 %s15, 1
      %s21 = ssub.s32 %s15, 2
      %s28 = sadd.s32 1, %s23
      %p29 = scmp.ge.s32.totalorder %s28, 4
      %s30 = scalar_select %p29, 0, %s28
      %s31 = sadd.s32 1, %s22
      %s32 = scalar_select %p29, %s31, %s22
      %p33 = scmp.ge.s32.totalorder %s32, 2
      %s34 = scalar_select %p33, 0, %s32
      %s36 = sadd.s32 %s35, 1
      %p39 = scmp.eq.s32.totalorder %s15, 7
      %p40 = scmp.ne.s32.totalorder %s35, %s37
      %p41 = scmp.eq.s32.totalorder %s15, 0
      %p42 = por %p40, %p41
      %p43 = scmp.ne.s32.totalorder %s35, %s37
      %p44 = scmp.eq.s32.totalorder %s20, 7
      %p45 = por %p43, %p44
      %p46 = scmp.ne.s32.totalorder %s37, %s38
      %p47 = scmp.eq.s32.totalorder %s20, 0
      %p48 = por %p46, %p47
      %p49 = scmp.ne.s32.totalorder %s37, %s38
      %p50 = scmp.eq.s32.totalorder %s21, 7
      %p51 = por %p49, %p50
      %p53 = scmp.ne.s32.totalorder %s38, %s52
      %p54 = scmp.eq.s32.totalorder %s21, 0
      %p55 = por %p53, %p54
      %s56 = ssub.s32 %s22, %s34
      %s57 = ssub.s32 %s23, %s30
      %s58 = sor.u32 %s56, %s57
      %p59 = scmp.eq.s32.totalorder %s58, 0
      %s61 = sadd.s32 %s60, 1
      %s62 = scalar_select %p59, %s60, %s61
      %p65 = pneg %p59
      %p66 = scmp.eq.s32.totalorder %s15, 7
      %p67 = por %p65, %p66
      %p68 = scmp.ne.s32.totalorder %s60, %s63
      %p69 = scmp.eq.s32.totalorder %s15, 0
      %p70 = por %p68, %p69
      %p71 = scmp.ne.s32.totalorder %s60, %s63
      %p72 = scmp.eq.s32.totalorder %s20, 7
      %p73 = por %p71, %p72
      %p74 = scmp.ne.s32.totalorder %s63, %s64
      %p75 = scmp.eq.s32.totalorder %s20, 0
      %p76 = por %p74, %p75
      %p77 = scmp.ne.s32.totalorder %s63, %s64
      %p78 = scmp.eq.s32.totalorder %s21, 7
      %p79 = por %p77, %p78
      %p81 = scmp.ne.s32.totalorder %s64, %s80
      %p82 = scmp.eq.s32.totalorder %s21, 0
      %p83 = por %p81, %p82
      %s85 = sadd.s32 %s84, 1
      %p88 = scmp.eq.s32.totalorder %s15, 7
      %p89 = scmp.ne.s32.totalorder %s84, %s86
      %p90 = scmp.eq.s32.totalorder %s15, 0
      %p91 = por %p89, %p90
      %p92 = scmp.ne.s32.totalorder %s84, %s86
      %p93 = scmp.eq.s32.totalorder %s20, 7
      %p94 = por %p92, %p93
      %p95 = scmp.ne.s32.totalorder %s86, %s87
      %p96 = scmp.eq.s32.totalorder %s20, 0
      %p97 = por %p95, %p96
      %p98 = scmp.ne.s32.totalorder %s86, %s87
      %p99 = scmp.eq.s32.totalorder %s21, 7
      %p100 = por %p98, %p99
      %p102 = scmp.ne.s32.totalorder %s87, %s101
      %p103 = scmp.eq.s32.totalorder %s21, 0
      %p104 = por %p102, %p103
      %s105 = ssub.s32 %s22, %s34
      %p106 = scmp.eq.s32.totalorder %s105, 0
      %s108 = sadd.s32 %s107, 1
      %s109 = scalar_select %p106, %s107, %s108
      %p112 = pneg %p106
      %p113 = scmp.eq.s32.totalorder %s15, 7
      %p114 = por %p112, %p113
      %p115 = scmp.ne.s32.totalorder %s107, %s110
      %p116 = scmp.eq.s32.totalorder %s15, 0
      %p117 = por %p115, %p116
      %p118 = scmp.ne.s32.totalorder %s107, %s110
      %p119 = scmp.eq.s32.totalorder %s20, 7
      %p120 = por %p118, %p119
      %p121 = scmp.ne.s32.totalorder %s110, %s111
      %p122 = scmp.eq.s32.totalorder %s20, 0
      %p123 = por %p121, %p122
      %p124 = scmp.ne.s32.totalorder %s110, %s111
      %p125 = scmp.eq.s32.totalorder %s21, 7
      %p126 = por %p124, %p125
      %p128 = scmp.ne.s32.totalorder %s111, %s127
      %p129 = scmp.eq.s32.totalorder %s21, 0
      %p130 = por %p128, %p129
      %s131 = ssub.s32 %s22, %s34
      %p132 = scmp.eq.s32.totalorder %s131, 0
      %s134 = sadd.s32 %s133, 1
      %s135 = scalar_select %p132, %s133, %s134
      %p138 = pneg %p132
      %p139 = scmp.eq.s32.totalorder %s15, 7
      %p140 = por %p138, %p139
      %p141 = scmp.ne.s32.totalorder %s133, %s136
      %p142 = scmp.eq.s32.totalorder %s15, 0
      %p143 = por %p141, %p142
      %p144 = scmp.ne.s32.totalorder %s133, %s136
      %p145 = scmp.eq.s32.totalorder %s20, 7
      %p146 = por %p144, %p145
      %p147 = scmp.ne.s32.totalorder %s136, %s137
      %p148 = scmp.eq.s32.totalorder %s20, 0
      %p149 = por %p147, %p148
      %p150 = scmp.ne.s32.totalorder %s136, %s137
      %p151 = scmp.eq.s32.totalorder %s21, 7
      %p152 = por %p150, %p151
      %p154 = scmp.ne.s32.totalorder %s137, %s153
      %p155 = scmp.eq.s32.totalorder %s21, 0
      %p156 = por %p154, %p155
      %p157 = scmp.le.s32.totalorder 1, %s15
      %p158 = scmp.lt.s32.totalorder %s15, 9
      %p159 = pnand %p157, %p158
      %p160 = pneg %p159
      // Predicated region
      $region9: #{tpu_custom_call.1} parent=5 // pred_check
        _
      $region10: #{tpu_custom_call.1} parent=5 // pred_check_branch
        %162 = sbr.rel (%p159) target = $region12
      $region11: #{tpu_custom_call.1} parent=5 // pred_region
        %s163 = ssub.s32 %s15, 1
        // Predicated region
        $region13: #{tpu_custom_call.1} parent=11 // pred_check
          %p164 = pneg %p48
        $region14: #{tpu_custom_call.1} parent=11 // pred_check_branch
          %166 = sbr.rel (%p164) target = $region16
        $region15: #{tpu_custom_call.1} parent=11 // pred_region
          %s168 = ssub.s32 16, 16
          %169 = vsyncadd [#allocation5], %s168
          %s171 = sshll.u32 %s0, 4
          %s172 = int_to_ptr.vmem [resolvable:$true] %s171
          %174 = dma.vmem_to_smem %s172, 16, [#allocation3], [#allocation5]
        $region16: #{tpu_custom_call.1} parent=11 // pred_fallthru
          _
        // Predicated region
        $region17: #{tpu_custom_call.1} parent=11 // pred_check
          %p175 = pneg %p97
        $region18: #{tpu_custom_call.1} parent=11 // pred_check_branch
          %177 = sbr.rel (%p175) target = $region20
        $region19: #{tpu_custom_call.1} parent=11 // pred_region
          _
        $region20: #{tpu_custom_call.1} parent=11 // pred_fallthru
          _
      $region12: #{tpu_custom_call.1} parent=5 // pred_fallthru
        _
      %p178 = scmp.lt.s32.totalorder %s15, 8
      // Predicated region
      $region21: #{tpu_custom_call.1} parent=5 // pred_check
        %p179 = pneg %p178
      $region22: #{tpu_custom_call.1} parent=5 // pred_check_branch
        %181 = sbr.rel (%p179) target = $region24
      $region23: #{tpu_custom_call.1} parent=5 // pred_region
        // Predicated region
        $region25: #{tpu_custom_call.1} parent=23 // pred_check
          %p182 = pneg %p70
        $region26: #{tpu_custom_call.1} parent=23 // pred_check_branch
          %184 = sbr.rel (%p182) target = $region28
        $region27: #{tpu_custom_call.1} parent=23 // pred_region
          %s185 = sand.u32 %s60, 1
          %s186 = scalar_lea.sflag [#allocation4], %s185
          %s187 = sand.u32 %s60, 1
          %s188 = smul.addr %s187, 16
          %s189 = scalar_lea.vmem [#allocation6], %s188
          %s191 = ssub.s32 256, 256
          %192 = vsyncadd %s186, %s191
          %s193 = smul.addr %s22, 8
          %s194 = sadd.s32 %s23, %s193
          %s195 = smul.addr %s194, 128
          %s196 = scalar_lea.hbm %s1, %s195
          %s197 = sshll.u32 %s189, 4
          %s198 = int_to_ptr.vmem [resolvable:$true] %s197
          %203 = dma.hbm_to_vmem [thread:$0]  %s196, 256, %s198, %s186, 512, 128, 8
        $region28: #{tpu_custom_call.1} parent=23 // pred_fallthru
          _
      $region24: #{tpu_custom_call.1} parent=5 // pred_fallthru
        _
      %p204 = scmp.le.s32.totalorder 1, %s15
      %p205 = scmp.lt.s32.totalorder %s15, 9
      %p206 = pnand %p204, %p205
      %p207 = pneg %p206
      // Predicated region
      $region29: #{tpu_custom_call.1} parent=5 // pred_check
        _
      $region30: #{tpu_custom_call.1} parent=5 // pred_check_branch
        %209 = sbr.rel (%p206) target = $region32
      $region31: #{tpu_custom_call.1} parent=5 // pred_region
        %s210 = ssub.s32 %s15, 1
        // Predicated region
        $region33: #{tpu_custom_call.1} parent=31 // pred_check
          %p211 = pneg %p48
        $region34: #{tpu_custom_call.1} parent=31 // pred_check_branch
          %213 = sbr.rel (%p211) target = $region36
        $region35: #{tpu_custom_call.1} parent=31 // pred_region
          %214 = dma.done [#allocation5], 16
        $region36: #{tpu_custom_call.1} parent=31 // pred_fallthru
          _
        %s215 = sand.u32 %s63, 1
        %s216 = scalar_lea.sflag [#allocation4], %s215
        %s217 = sand.u32 %s63, 1
        %s218 = smul.addr %s217, 16
        %s219 = scalar_lea.vmem [#allocation6], %s218
        // Predicated region
        $region37: #{tpu_custom_call.1} parent=31 // pred_check
          %p220 = pneg %p76
        $region38: #{tpu_custom_call.1} parent=31 // pred_check_branch
          %222 = sbr.rel (%p220) target = $region40
        $region39: #{tpu_custom_call.1} parent=31 // pred_region
          %223 = dma.done %s216, 256
        $region40: #{tpu_custom_call.1} parent=31 // pred_fallthru
          _
        %224 = sfence
        %p225 = pneg %p48
        %p226 = pneg %p45
        %s227 = sand.u32 %s63, 1
        %s228 = scalar_lea.sflag [#allocation4], %s227
        %s229 = sand.u32 %s63, 1
        %s230 = smul.addr %s229, 16
        %s231 = scalar_lea.vmem [#allocation6], %s230
        %p232 = pneg %p76
        %p233 = pneg %p73
        %p234 = pneg %p97
        %p235 = pneg %p94
        %p236 = pneg %p123
        %p237 = pneg %p120
        %p238 = scmp.lt.s32.totalorder %s24, 1
        %s239 = scalar_select %p238, %s24, 1
        %s240 = smul.addr %s239, 2
        %s241 = smul.addr %s240, 8
        %s242 = scalar_lea.vmem %s3, %s241
        %p243 = pneg %p149
        %p244 = pneg %p146
        %p245 = scmp.lt.s32.totalorder %s24, 1
        %s246 = scalar_select %p245, %s24, 1
        %s247 = smul.addr %s246, 5
        %s248 = smul.addr %s247, 8
        %s249 = scalar_lea.vmem %s4, %s248
        %p250 = scmp.lt.s32.totalorder %s24, 1
        %s251 = scalar_select %p250, %s24, 1
        %s252 = smul.addr %s251, 2
        %s253 = smul.addr %s252, 8
        %s254 = scalar_lea.vmem %s3, %s253
        %p255 = scmp.lt.s32.totalorder %s24, 1
        %s256 = scalar_select %p255, %s24, 1
        %s257 = smul.addr %s256, 5
        %s258 = smul.addr %s257, 8
        %s259 = scalar_lea.vmem %s4, %s258
        %p260 = scmp.eq.s32.totalorder %s25, 3
        %p261 = scmp.eq.s32.totalorder %s25, 0
        // Predicated region
        $region41: #{tpu_custom_call.1} parent=31 // pred_check
          %p262 = pneg %p261
        $region42: #{tpu_custom_call.1} parent=31 // pred_check_branch
          %264 = sbr.rel (%p262) target = $region44
        $region43: #{tpu_custom_call.1} parent=31 // pred_region
          %vm265 = vcmask 7168
          %266 = vst.msk [vmem:[#allocation2] sm:$0xff] %vm265, 0.0
          %267 = vst.msk [vmem:[#allocation2 + $0x8] sm:$0xff] %vm265, 0.0
        $region44: #{tpu_custom_call.1} parent=31 // pred_fallthru
          _
        %p268 = scmp.ne.s32.totalorder %s25, 3
        // Predicated region
        $region45: #{tpu_custom_call.1} parent=31 // pred_check
          %p269 = pneg %p268
        $region46: #{tpu_custom_call.1} parent=31 // pred_check_branch
          %271 = sbr.rel (%p269) target = $region48
        $region47: #{tpu_custom_call.1} parent=31 // pred_region
          %v272 = vld [vmem:[%s219] sm:$0xff]
          %v273 = vld [vmem:[%s219 + $0x8] sm:$0xff]
          %v274 = vld [vmem:[#allocation2] sm:$0xff]
          %v275 = vld [vmem:[#allocation2 + $0x8] sm:$0xff]
          %276 = vadd.xlane.f32.xlu0 %v272
          %v277 = vpop.xlane.xlu0 %276
          %278 = vadd.xlane.f32.xlu0 %v273
          %v279 = vpop.xlane.xlu0 %278
          %v280 = vadd.f32 %v274, %v277
          %v281 = vadd.f32 %v275, %v279
          %vm282 = vcmask 7168
          %283 = vst.msk [vmem:[#allocation2] sm:$0xff] %vm282, %v280
          %284 = vst.msk [vmem:[#allocation2 + $0x8] sm:$0xff] %vm282, %v281
        $region48: #{tpu_custom_call.1} parent=31 // pred_fallthru
          _
        // Predicated region
        $region49: #{tpu_custom_call.1} parent=31 // pred_check
          %p285 = pneg %p260
        $region50: #{tpu_custom_call.1} parent=31 // pred_check_branch
          %287 = sbr.rel (%p285) target = $region52
        $region51: #{tpu_custom_call.1} parent=31 // pred_region
          %v288 = vld [vmem:[%s219] sm:$0xff]
          %v289 = vld [vmem:[%s219 + $0x8] sm:$0xff]
          %s290 = smul.u32 %s25, 128
          %s291 = ssub.s32 400, %s290
          %v292 = vlaneseq
          %v293 = vand.u32 %v292, 127
          %v294 = vstv %s291
          %vm295 = vcmp.lt.s32.totalorder %v293, %v294
          %v296 = vsel %vm295, %v288, 0.0
          %v297 = vsel %vm295, %v289, 0.0
          %v298 = vld [vmem:[#allocation2] sm:$0xff]
          %v299 = vld [vmem:[#allocation2 + $0x8] sm:$0xff]
          %300 = vadd.xlane.f32.xlu0 %v296
          %v301 = vpop.xlane.xlu0 %300
          %302 = vadd.xlane.f32.xlu0 %v297
          %v303 = vpop.xlane.xlu0 %302
          %v304 = vadd.f32 %v298, %v301
          %v305 = vadd.f32 %v299, %v303
          %vm306 = vcmask 7168
          %307 = vst.msk [vmem:[#allocation2] sm:$0xff] %vm306, %v304
          %308 = vst.msk [vmem:[#allocation2 + $0x8] sm:$0xff] %vm306, %v305
          %v309 = vld [vmem:[#allocation2] sm:$0xff]
          %v310 = vld [vmem:[#allocation2 + $0x8] sm:$0xff]
          %v311 = vmul.f32 %v309, 0.0025
          %v312 = vmul.f32 %v310, 0.0025
          %s313 = sld [smem:[#allocation3]]
          %s314 = sld [smem:[#allocation3 + $0x1]]
          %s315 = sld [smem:[#allocation3 + $0x2]]
          %v316 = vlaneseq
          %v317 = vshrl.u32 %v316, 7
          %v318 = vadd.s32 %v317, 8
          %v319 = vsub.s32 %v317, 1
          %v320 = vsub.s32 %v318, 1
          %vm321 = vcmp.eq.s32.totalorder %v293, %v319
          %vm322 = vcmp.eq.s32.totalorder %v293, %v320
          %v323 = vstv %s313
          %v324 = vsel %vm321, %v323, 0.0
          %v325 = vsel %vm322, %v323, 0.0
          %vm326 = vcmp.eq.s32.totalorder %v293, %v317
          %vm327 = vcmp.eq.s32.totalorder %v293, %v318
          %v328 = vstv %s314
          %v329 = vsel %vm326, %v328, 0.0
          %v330 = vsel %vm327, %v328, 0.0
          %v331 = vadd.f32 %v324, %v329
          %v332 = vadd.f32 %v325, %v330
          %v333 = vadd.s32 %v317, 1
          %v334 = vadd.s32 %v318, 1
          %vm335 = vcmp.eq.s32.totalorder %v293, %v333
          %vm336 = vcmp.eq.s32.totalorder %v293, %v334
          %v337 = vstv %s315
          %v338 = vsel %vm335, %v337, 0.0
          %v339 = vsel %vm336, %v337, 0.0
          %v340 = vadd.f32 %v331, %v338
          %v341 = vadd.f32 %v332, %v339
          %vm342 = vcmask 130048
          %v344 = vsel %vm342, %v340, 0
          %v347 = vsel %vm342, %v341, 0
          %349 = vmatprep.subr.mxu0 0.0
          %350 = vmatpush1.msra.mxu0 0.0
          %351 = vmatprep.subr.mxu0 0.0
          %352 = vmatpush1.msra.mxu0 0.0
          %353 = vmatprep.subr.mxu0 0.0
          %354 = vmatpush1.msra.mxu0 0.0
          %355 = vmatprep.subr.mxu0 0.0
          %356 = vmatpush1.msra.mxu0 0.0
          %357 = vmatprep.subr.mxu0 0.0
          %358 = vmatpush1.msra.mxu0 0.0
          %359 = vmatprep.subr.mxu0 0.0
          %360 = vmatpush1.msra.mxu0 0.0
          %361 = vmatprep.subr.mxu0 0.0
          %362 = vmatpush1.msra.mxu0 0.0
          %363 = vmatprep.subr.mxu0 0.0
          %364 = vmatpush1.msra.mxu0 0.0
          %365 = vmatprep.subr.mxu0 0.0
          %366 = vmatpush1.msra.mxu0 0.0
          %367 = vmatprep.subr.mxu0 0.0
          %368 = vmatpush1.msra.mxu0 0.0
          %369 = vmatprep.subr.mxu0 0.0
          %370 = vmatpush1.msra.mxu0 0.0
          %371 = vmatprep.subr.mxu0 0.0
          %372 = vmatpush1.msra.mxu0 0.0
          %373 = vmatprep.subr.mxu0 0.0
          %374 = vmatpush1.msra.mxu0 0.0
          %375 = vmatprep.subr.mxu0 0.0
          %376 = vmatpush1.msra.mxu0 0.0
          %377 = vmatprep.subr.mxu0 0.0
          %378 = vmatpush1.msra.mxu0 %v312
          %379 = vmatprep.subr.mxu0 0.0
          %380 = vmatpush1.msra.mxu0 %v311
          %381 = vmatprep.subr.mxu0 0.0
          %382 = vmatpush2.msra.mxu0 0.0
          %383 = vmatprep.subr.mxu0 0.0
          %384 = vmatpush2.msra.mxu0 0.0
          %385 = vmatprep.subr.mxu0 0.0
          %386 = vmatpush2.msra.mxu0 0.0
          %387 = vmatprep.subr.mxu0 0.0
          %388 = vmatpush2.msra.mxu0 0.0
          %389 = vmatprep.subr.mxu0 0.0
          %390 = vmatpush2.msra.mxu0 0.0
          %391 = vmatprep.subr.mxu0 0.0
          %392 = vmatpush2.msra.mxu0 0.0
          %393 = vmatprep.subr.mxu0 0.0
          %394 = vmatpush2.msra.mxu0 0.0
          %395 = vmatprep.subr.mxu0 0.0
          %396 = vmatpush2.msra.mxu0 0.0
          %397 = vmatprep.subr.mxu0 0.0
          %398 = vmatpush2.msra.mxu0 0.0
          %399 = vmatprep.subr.mxu0 0.0
          %400 = vmatpush2.msra.mxu0 0.0
          %401 = vmatprep.subr.mxu0 0.0
          %402 = vmatpush2.msra.mxu0 0.0
          %403 = vmatprep.subr.mxu0 0.0
          %404 = vmatpush2.msra.mxu0 0.0
          %405 = vmatprep.subr.mxu0 0.0
          %406 = vmatpush2.msra.mxu0 0.0
          %407 = vmatprep.subr.mxu0 0.0
          %408 = vmatpush2.msra.mxu0 0.0
          %409 = vmatprep.subr.mxu0 0.0
          %410 = vmatpush2.msra.mxu0 0.0
          %411 = vmatprep.subr.mxu0 0.0
          %412 = vmatpush2.msra.mxu0 0.0
          %413 = vmatprep.mubr.f32.mxu0 0.0
          %414 = vmatmul.mubr.f32.gmra.mxu0 %v344
          %v415 = vpop.f32.mrf.mxu0
          %v416 = vadd.f32 0.0, %v415
          %v417 = vpop.f32.mrf.mxu0
          %418 = vmatprep.mubr.f32.mxu0 0.0
          %419 = vmatmul.mubr.f32.gmra.mxu0 %v347
          %v420 = vpop.f32.mrf.mxu0
          %v421 = vadd.f32 0.0, %v420
          %v422 = vpop.f32.mrf.mxu0
          %423 = vdwg.mxu0
          %v424 = vxor.u32 %v416, 2147483648
          %v425 = vxor.u32 %v421, 2147483648
          %v426 = vmul.f32 %v424, 1.442695
          %v427 = vpow.pop %v426
          %v428 = vmul.f32 %v425, 1.442695
          %v429 = vpow.pop %v428
          %v430 = vadd.f32 %v427, 1.0
          %v431 = vadd.f32 %v429, 1.0
          %v432 = vrcp.pop %v430
          %v433 = vmul.f32 1.0, %v432
          %v434 = vrcp.pop %v431
          %v435 = vmul.f32 1.0, %v434
          %436 = vst.msk [vmem:[%s254] sm:$0xff] %vm306, %v433
          %437 = vst.msk [vmem:[%s254 + $0x8] sm:$0xff] %vm306, %v435
          %v438 = vld [vmem:[%s2] sm:$0xff]
          %v439 = vld [vmem:[%s2 + $0x8] sm:$0xff]
          %v440 = vld [vmem:[%s2 + $0x10] sm:$0xff]
          %v441 = vld [vmem:[%s2 + $0x18] sm:$0xff]
          %v442 = vld [vmem:[%s2 + $0x20] sm:$0xf]
          %v444 = vsel %vm342, %v438, 0
          %v447 = vsel %vm342, %v439, 0
          %v450 = vsel %vm342, %v440, 0
          %v453 = vsel %vm342, %v441, 0
          %v456 = vsel %vm342, %v442, 0
          %458 = vmatprep.subr.mxu0 0.0
          %459 = vmatpush1.msra.mxu0 0.0
          %460 = vmatprep.subr.mxu0 0.0
          %461 = vmatpush1.msra.mxu0 0.0
          %462 = vmatprep.subr.mxu0 0.0
          %463 = vmatpush1.msra.mxu0 0.0
          %464 = vmatprep.subr.mxu0 0.0
          %465 = vmatpush1.msra.mxu0 0.0
          %466 = vmatprep.subr.mxu0 0.0
          %467 = vmatpush1.msra.mxu0 0.0
          %468 = vmatprep.subr.mxu0 0.0
          %469 = vmatpush1.msra.mxu0 0.0
          %470 = vmatprep.subr.mxu0 0.0
          %471 = vmatpush1.msra.mxu0 0.0
          %472 = vmatprep.subr.mxu0 0.0
          %473 = vmatpush1.msra.mxu0 0.0
          %474 = vmatprep.subr.mxu0 0.0
          %475 = vmatpush1.msra.mxu0 0.0
          %476 = vmatprep.subr.mxu0 0.0
          %477 = vmatpush1.msra.mxu0 0.0
          %478 = vmatprep.subr.mxu0 0.0
          %479 = vmatpush1.msra.mxu0 0.0
          %480 = vmatprep.subr.mxu0 0.0
          %481 = vmatpush1.msra.mxu0 0.0
          %482 = vmatprep.subr.mxu0 0.0
          %483 = vmatpush1.msra.mxu0 0.0
          %484 = vmatprep.subr.mxu0 0.0
          %485 = vmatpush1.msra.mxu0 0.0
          %486 = vmatprep.subr.mxu0 0.0
          %487 = vmatpush1.msra.mxu0 %v421
          %488 = vmatprep.subr.mxu0 0.0
          %489 = vmatpush1.msra.mxu0 %v416
          %490 = vmatprep.subr.mxu0 0.0
          %491 = vmatpush2.msra.mxu0 0.0
          %492 = vmatprep.subr.mxu0 0.0
          %493 = vmatpush2.msra.mxu0 0.0
          %494 = vmatprep.subr.mxu0 0.0
          %495 = vmatpush2.msra.mxu0 0.0
          %496 = vmatprep.subr.mxu0 0.0
          %497 = vmatpush2.msra.mxu0 0.0
          %498 = vmatprep.subr.mxu0 0.0
          %499 = vmatpush2.msra.mxu0 0.0
          %500 = vmatprep.subr.mxu0 0.0
          %501 = vmatpush2.msra.mxu0 0.0
          %502 = vmatprep.subr.mxu0 0.0
          %503 = vmatpush2.msra.mxu0 0.0
          %504 = vmatprep.subr.mxu0 0.0
          %505 = vmatpush2.msra.mxu0 0.0
          %506 = vmatprep.subr.mxu0 0.0
          %507 = vmatpush2.msra.mxu0 0.0
          %508 = vmatprep.subr.mxu0 0.0
          %509 = vmatpush2.msra.mxu0 0.0
          %510 = vmatprep.subr.mxu0 0.0
          %511 = vmatpush2.msra.mxu0 0.0
          %512 = vmatprep.subr.mxu0 0.0
          %513 = vmatpush2.msra.mxu0 0.0
          %514 = vmatprep.subr.mxu0 0.0
          %515 = vmatpush2.msra.mxu0 0.0
          %516 = vmatprep.subr.mxu0 0.0
          %517 = vmatpush2.msra.mxu0 0.0
          %518 = vmatprep.subr.mxu0 0.0
          %519 = vmatpush2.msra.mxu0 0.0
          %520 = vmatprep.subr.mxu0 0.0
          %521 = vmatpush2.msra.mxu0 0.0
          %522 = vmatprep.mubr.f32.mxu0 0.0
          %523 = vmatmul.mubr.f32.gmra.mxu0 %v444
          %v524 = vpop.f32.mrf.mxu0
          %v525 = vadd.f32 0.0, %v524
          %v526 = vpop.f32.mrf.mxu0
          %527 = vmatprep.mubr.f32.mxu0 0.0
          %528 = vmatmul.mubr.f32.gmra.mxu0 %v447
          %v529 = vpop.f32.mrf.mxu0
          %v530 = vadd.f32 0.0, %v529
          %v531 = vpop.f32.mrf.mxu0
          %532 = vmatprep.mubr.f32.mxu0 0.0
          %533 = vmatmul.mubr.f32.gmra.mxu0 %v450
          %v534 = vpop.f32.mrf.mxu0
          %v535 = vadd.f32 0.0, %v534
          %v536 = vpop.f32.mrf.mxu0
          %537 = vmatprep.mubr.f32.mxu0 0.0
          %538 = vmatmul.mubr.f32.gmra.mxu0 %v453
          %v539 = vpop.f32.mrf.mxu0
          %v540 = vadd.f32 0.0, %v539
          %v541 = vpop.f32.mrf.mxu0
          %542 = vmatprep.mubr.f32.mxu0 0.0
          %543 = vmatmul.mubr.f32.gmra.mxu0 %v456
          %v544 = vpop.f32.mrf.mxu0
          %v545 = vadd.f32 0.0, %v544
          %v546 = vpop.f32.mrf.mxu0
          %547 = vdwg.mxu0
          %v548 = vadd.s32 %v317, 16
          %v549 = vadd.s32 %v317, 24
          %v550 = vadd.s32 %v317, 32
          %vm551 = vcmp.ge.s32.totalorder %v317, 32
          %vm552 = vcmp.ge.s32.totalorder %v318, 32
          %vm553 = vcmp.ge.s32.totalorder %v548, 32
          %vm554 = vcmp.ge.s32.totalorder %v549, 32
          %vm555 = vcmp.ge.s32.totalorder %v550, 32
          %v556 = vsel %vm551, %v525, -inf
          %v557 = vsel %vm552, %v530, -inf
          %v558 = vsel %vm553, %v535, -inf
          %v559 = vsel %vm554, %v540, -inf
          %v560 = vsel %vm555, %v545, -inf
          %v561 = vsel %vm306, %v556, -inf
          %v562 = vsel %vm306, %v557, -inf
          %v563 = vsel %vm306, %v558, -inf
          %v564 = vsel %vm306, %v559, -inf
          %vm565 = vcmask 3072
          %v566 = vsel %vm565, %v560, -inf
          %v567 = vmax.f32 %v561, %v566
          %v568 = vmax.f32 %v567, %v562
          %v569 = vmax.f32 %v563, %v564
          %v570 = vmax.f32 %v568, %v569
          %v571 = vrot.slane %v570, 4
          %v572 = vmax.f32 %v570, %v571
          %v573 = vrot.slane %v572, 2
          %v574 = vmax.f32 %v572, %v573
          %v575 = vrot.slane %v574, 1
          %v576 = vmax.f32 %v574, %v575
          %v577 = vsub.f32 %v556, %v576
          %v578 = vsub.f32 %v557, %v576
          %v579 = vsub.f32 %v558, %v576
          %v580 = vsub.f32 %v559, %v576
          %v581 = vsub.f32 %v560, %v576
          %v582 = vmul.f32 %v577, 1.442695
          %v583 = vpow.pop %v582
          %v584 = vmul.f32 %v578, 1.442695
          %v585 = vpow.pop %v584
          %v586 = vmul.f32 %v579, 1.442695
          %v587 = vpow.pop %v586
          %v588 = vmul.f32 %v580, 1.442695
          %v589 = vpow.pop %v588
          %v590 = vmul.f32 %v581, 1.442695
          %v591 = vpow.pop %v590
          %v592 = vsel %vm306, %v583, 0.0
          %v593 = vsel %vm306, %v585, 0.0
          %v594 = vadd.f32 %v592, %v593
          %v595 = vsel %vm306, %v587, 0.0
          %v596 = vadd.f32 %v594, %v595
          %v597 = vsel %vm306, %v589, 0.0
          %v598 = vadd.f32 %v596, %v597
          %v599 = vsel %vm565, %v591, 0.0
          %v600 = vadd.f32 %v598, %v599
          %v601 = vrot.slane %v600, 4
          %v602 = vadd.f32 %v600, %v601
          %v603 = vrot.slane %v602, 2
          %v604 = vadd.f32 %v602, %v603
          %v605 = vrot.slane %v604, 1
          %v606 = vadd.f32 %v604, %v605
          %v607 = vrcp.pop %v606
          %v608 = vmul.f32 %v583, %v607
          %v609 = vmul.f32 %v585, %v607
          %v610 = vmul.f32 %v587, %v607
          %v611 = vmul.f32 %v589, %v607
          %v612 = vmul.f32 %v591, %v607
          %v613 = vxor.u32 %v525, 2147483648
          %v614 = vxor.u32 %v530, 2147483648
          %v615 = vxor.u32 %v535, 2147483648
          %v616 = vxor.u32 %v540, 2147483648
          %v617 = vxor.u32 %v545, 2147483648
          %v618 = vmul.f32 %v613, 1.442695
          %v619 = vpow.pop %v618
          %v620 = vmul.f32 %v614, 1.442695
          %v621 = vpow.pop %v620
          %v622 = vmul.f32 %v615, 1.442695
          %v623 = vpow.pop %v622
          %v624 = vmul.f32 %v616, 1.442695
          %v625 = vpow.pop %v624
          %v626 = vmul.f32 %v617, 1.442695
          %v627 = vpow.pop %v626
          %v628 = vadd.f32 %v619, 1.0
          %v629 = vadd.f32 %v621, 1.0
          %v630 = vadd.f32 %v623, 1.0
          %v631 = vadd.f32 %v625, 1.0
          %v632 = vadd.f32 %v627, 1.0
          %v633 = vrcp.pop %v628
          %v634 = vmul.f32 1.0, %v633
          %v635 = vrcp.pop %v629
          %v636 = vmul.f32 1.0, %v635
          %v637 = vrcp.pop %v630
          %v638 = vmul.f32 1.0, %v637
          %v639 = vrcp.pop %v631
          %v640 = vmul.f32 1.0, %v639
          %v641 = vrcp.pop %v632
          %v642 = vmul.f32 1.0, %v641
          %v643 = vsel %vm551, %v608, %v634
          %v644 = vsel %vm552, %v609, %v636
          %v645 = vsel %vm553, %v610, %v638
          %v646 = vsel %vm554, %v611, %v640
          %v647 = vsel %vm555, %v612, %v642
          %648 = vst.msk [vmem:[%s259] sm:$0xff] %vm306, %v643
          %649 = vst.msk [vmem:[%s259 + $0x8] sm:$0xff] %vm306, %v644
          %650 = vst.msk [vmem:[%s259 + $0x10] sm:$0xff] %vm306, %v645
          %651 = vst.msk [vmem:[%s259 + $0x18] sm:$0xff] %vm306, %v646
          %652 = vst.msk [vmem:[%s259 + $0x20] sm:$0xf] %vm565, %v647
        $region52: #{tpu_custom_call.1} parent=31 // pred_fallthru
          _
        %p653 = scmp.lt.s32.totalorder %s24, 1
        %s654 = scalar_select %p653, %s24, 1
        %s655 = smul.addr %s654, 2
        %s656 = smul.addr %s655, 8
        %s657 = scalar_lea.vmem %s3, %s656
        %p658 = scmp.lt.s32.totalorder %s24, 1
        %s659 = scalar_select %p658, %s24, 1
        %s660 = smul.addr %s659, 5
        %s661 = smul.addr %s660, 8
        %s662 = scalar_lea.vmem %s4, %s661
        // Predicated region
        $region53: #{tpu_custom_call.1} parent=31 // pred_check
          %p663 = pneg %p120
        $region54: #{tpu_custom_call.1} parent=31 // pred_check_branch
          %665 = sbr.rel (%p663) target = $region56
        $region55: #{tpu_custom_call.1} parent=31 // pred_region
          _
        $region56: #{tpu_custom_call.1} parent=31 // pred_fallthru
          _
        // Predicated region
        $region57: #{tpu_custom_call.1} parent=31 // pred_check
          %p666 = pneg %p146
        $region58: #{tpu_custom_call.1} parent=31 // pred_check_branch
          %668 = sbr.rel (%p666) target = $region60
        $region59: #{tpu_custom_call.1} parent=31 // pred_region
          _
        $region60: #{tpu_custom_call.1} parent=31 // pred_fallthru
          _
      $region32: #{tpu_custom_call.1} parent=5 // pred_fallthru
        _
      %p669 = scmp.le.s32.totalorder 2, %s15
      // Predicated region
      $region61: #{tpu_custom_call.1} parent=5 // pred_check
        %p670 = pneg %p669
      $region62: #{tpu_custom_call.1} parent=5 // pred_check_branch
        %672 = sbr.rel (%p670) target = $region64
      $region63: #{tpu_custom_call.1} parent=5 // pred_region
        %s673 = ssub.s32 %s15, 2
        // Predicated region
        $region65: #{tpu_custom_call.1} parent=63 // pred_check
          %p674 = pneg %p126
        $region66: #{tpu_custom_call.1} parent=63 // pred_check_branch
          %676 = sbr.rel (%p674) target = $region68
        $region67: #{tpu_custom_call.1} parent=63 // pred_region
          %p677 = scmp.lt.s32.totalorder %s26, 1
          %s678 = scalar_select %p677, %s26, 1
          %s679 = smul.addr %s678, 2
          %s680 = smul.addr %s679, 8
          %s681 = scalar_lea.vmem %s3, %s680
        $region68: #{tpu_custom_call.1} parent=63 // pred_fallthru
          _
        // Predicated region
        $region69: #{tpu_custom_call.1} parent=63 // pred_check
          %p682 = pneg %p152
        $region70: #{tpu_custom_call.1} parent=63 // pred_check_branch
          %684 = sbr.rel (%p682) target = $region72
        $region71: #{tpu_custom_call.1} parent=63 // pred_region
          %p685 = scmp.lt.s32.totalorder %s26, 1
          %s686 = scalar_select %p685, %s26, 1
          %s687 = smul.addr %s686, 5
          %s688 = smul.addr %s687, 8
          %s689 = scalar_lea.vmem %s4, %s688
        $region72: #{tpu_custom_call.1} parent=63 // pred_fallthru
          _
      $region64: #{tpu_custom_call.1} parent=5 // pred_fallthru
        _
    $region6: #{tpu_custom_call.1} parent=1 // loop_footer
      %s19 = sadd.s32 1, %s15
    $region7: #{tpu_custom_call.1} parent=1 // loop_footer_branch
      %14 = sbr.rel target = $region3
    $region8: #{tpu_custom_call.1} parent=1 // loop_exit
      _
    %690 = vsyncpa [#allocation4], 1
    %s691 = scalar_lea.sflag [#allocation4], 1
    %692 = vsyncpa %s691, 1
    %693 = vsyncpa [#allocation5], 1
    %s694 = scalar_lea.sflag [#allocation5], 1
    %695 = vsyncpa %s694, 1

</llo_original>
